<compile_context>
chip_gen: v7x
topology: tpu7x:2x2x1
jax: 0.10.0
libtpu: 0.0.40
codegen_flags: <defaults>
</compile_context>

<pallas_src>
import jax
import jax.numpy as jnp
from jax.experimental import pallas as pl
from jax.experimental.pallas import tpu as pltpu

_DEFAULT_TILE_M = 8192   # 8 sublane-chunks x 8192 lanes = 65536 poses per grid step


def _angle_abs_sum(pa, ga):
    """Sum_k |R(pa)_k - R(ga)_k| over the 9 rotation-matrix entries.

    pa, ga: (3, 8, T) euler angles (rx, ry, rz), lane-dense.  Returns (8, T).
    Entries are produced/consumed one at a time to keep VMEM temporaries low.
    """
    sxp, cxp = jnp.sin(pa[0]), jnp.cos(pa[0])
    syp, cyp = jnp.sin(pa[1]), jnp.cos(pa[1])
    szp, czp = jnp.sin(pa[2]), jnp.cos(pa[2])
    sxg, cxg = jnp.sin(ga[0]), jnp.cos(ga[0])
    syg, cyg = jnp.sin(ga[1]), jnp.cos(ga[1])
    szg, czg = jnp.sin(ga[2]), jnp.cos(ga[2])

    def entries(sx, cx, sy, cy, sz, cz):
        # R = Rz @ Ry @ Rx, row-major
        yield cy * cz
        yield sx * sy * cz - cx * sz
        yield cx * sy * cz + sx * sz
        yield cy * sz
        yield sx * sy * sz + cx * cz
        yield cx * sy * sz - sx * cz
        yield -sy
        yield sx * cy
        yield cx * cy

    total = None
    for ep, eg in zip(entries(sxp, cxp, syp, cyp, szp, czp),
                      entries(sxg, cxg, syg, cyg, szg, czg)):
        d = jnp.abs(ep - eg)
        total = d if total is None else total + d
    return total


def _make_kernel(tile_m, fold_w, m_total, n_valid, trans_dim, angle_weight):
    w_ang = float(angle_weight) / (float(n_valid) * 9.0)
    w_trn = 1.0 / (float(n_valid) * float(trans_dim))
    n_fold = tile_m // fold_w
    needs_mask = (m_total % tile_m) != 0   # only the last (partial) block carries DMA garbage

    def kernel(p_ref, g_ref, out_ref):
        # (D, 8, tile_m) lane-dense blocks; upcast (free VPU slack) in case of bf16 ingest.
        p = p_ref[...].astype(jnp.float32)
        g = g_ref[...].astype(jnp.float32)

        # TODO(synk): simple_RPMG.apply(..., 1/4, 0.01) forward is the identity on exact rotation
        # matrices; its custom manifold *backward* is not implemented (no custom_vjp) -> eval only.
        ang = _angle_abs_sum(p[0:3], g[0:3])               # (8, tile_m)

        trn = jnp.abs(p[3] - g[3])                         # (8, tile_m)
        for c in range(4, 3 + trans_dim):
            trn = trn + jnp.abs(p[c] - g[c])

        combined = w_ang * ang + w_trn * trn               # (8, tile_m) per-pose contribution

        if needs_mask:
            i = pl.program_id(0)
            lane = jax.lax.broadcasted_iota(jnp.int32, (8, tile_m), 1)
            combined = jnp.where(lane < (m_total - i * tile_m), combined, 0.0)

        # Fold tile_m lanes down to fold_w lanes (static, vreg-aligned slice-adds).
        acc = combined[:, 0:fold_w]
        for k in range(1, n_fold):
            acc = acc + combined[:, k * fold_w:(k + 1) * fold_w]

        out_ref[0, :, :] = acc                             # lane-dense partial sums

    return kernel


def _pose_loss_partials(p3, g3, *, n_valid, trans_dim, angle_weight):
    """p3, g3: (D, 8, M) chunked feature-major blocks. Returns (num_blocks, 8, fold_w) partials."""
    D, _, M = p3.shape
    tile_m = min(_DEFAULT_TILE_M, M)                       # multiple of 128, or == full dim
    fold_w = 128 if tile_m % 128 == 0 else tile_m
    num_blocks = pl.cdiv(M, tile_m)

    kernel = _make_kernel(tile_m=tile_m, fold_w=fold_w, m_total=M,
                          n_valid=n_valid, trans_dim=trans_dim, angle_weight=angle_weight)

    return pl.pallas_call(
        kernel,
        out_shape=jax.ShapeDtypeStruct((num_blocks, 8, fold_w), jnp.float32),
        grid=(num_blocks,),
        in_specs=[
            pl.BlockSpec((D, 8, tile_m), lambda i: (0, 0, i)),
            pl.BlockSpec((D, 8, tile_m), lambda i: (0, 0, i)),
        ],
        out_specs=pl.BlockSpec((1, 8, fold_w), lambda i: (i, 0, 0)),
        compiler_params=pltpu.CompilerParams(
            dimension_semantics=("parallel",),        # both TCs split the grid on v7x
            vmem_limit_bytes=32 * 1024 * 1024,        # ~6 MiB blocks + temporaries, safe on v5e..v7x
        ),
    )(p3, g3)


def rpmg_pose_loss_feature_major(poses_fm, gts_fm, angle_weight=100.0):
    """Preferred entry point: poses_fm / gts_fm are FEATURE-MAJOR [D, N] (D=3 euler + translations).

    No layout pass is needed: the (D, N) -> (D, 8, M) chunking below is a free contiguous reshape.
    """
    D, N = poses_fm.shape
    assert gts_fm.shape == (D, N)
    assert D >= 4, "need 3 euler dims + at least 1 translation dim"

    M = -(-N // 8)
    pad = 8 * M - N
    if pad:
        # Zero-padded poses contribute exactly 0 to both L1 sums (identical rotations/translations).
        poses_fm = jnp.pad(poses_fm, ((0, 0), (0, pad)))
        gts_fm = jnp.pad(gts_fm, ((0, 0), (0, pad)))

    p3 = poses_fm.reshape(D, 8, M)   # free reshape: row c covers poses [c*M, (c+1)*M)
    g3 = gts_fm.reshape(D, 8, M)

    partials = _pose_loss_partials(p3, g3, n_valid=N, trans_dim=D - 3,
                                   angle_weight=float(angle_weight))
    return jnp.sum(partials)


def rpmg_pose_loss(poses, gts, weights=None, use_weighted_loss=True, angle_weight=100.0):
    """Module-compatible entry point: poses, gts are [B, S, D] like the PyTorch forward.

    NOTE: this convenience path performs ONE XLA layout pass ([B,S,D] -> [D, B*S]).  Producers that
    can emit feature-major data should call rpmg_pose_loss_feature_major directly to avoid it.
    `weights` / `use_weighted_loss` are ignored, matching the PyTorch forward.
    """
    B, S, D = poses.shape
    n = B * S
    p_fm = poses.reshape(n, D).T
    g_fm = gts.reshape(n, D).T
    return rpmg_pose_loss_feature_major(p_fm, g_fm, angle_weight=angle_weight)


def _reference_loss(poses, gts, angle_weight=100.0):
    """Pure-JAX reference for correctness check (same etr convention)."""
    def etr(a):
        rx, ry, rz = a[..., 0], a[..., 1], a[..., 2]
        sx, cx = jnp.sin(rx), jnp.cos(rx)
        sy, cy = jnp.sin(ry), jnp.cos(ry)
        sz, cz = jnp.sin(rz), jnp.cos(rz)
        return jnp.stack([
            cy * cz, sx * sy * cz - cx * sz, cx * sy * cz + sx * sz,
            cy * sz, sx * sy * sz + cx * cz, cx * sy * sz - sx * cz,
            -sy,     sx * cy,                cx * cy,
        ], axis=-1)
    angle_loss = jnp.mean(jnp.abs(etr(poses[:, :, :3]) - etr(gts[:, :, :3])))
    translation_loss = jnp.mean(jnp.abs(poses[:, :, 3:] - gts[:, :, 3:]))
    return angle_weight * angle_loss + translation_loss


if __name__ == "__main__":
    key = jax.random.PRNGKey(0)
    B, S, D = 2, 8, 6   # small shapes: batch=2, seq=8, pose dim = 3 euler + 3 translation
    k1, k2 = jax.random.split(key)
    poses = jax.random.uniform(k1, (B, S, D), jnp.float32, minval=-1.0, maxval=1.0)
    gts = jax.random.uniform(k2, (B, S, D), jnp.float32, minval=-1.0, maxval=1.0)
    weights = jnp.ones((B, S), jnp.float32)   # unused by the forward, as in the PyTorch module

    # Module-compatible path ([B, S, D], pays one layout pass).
    loss = rpmg_pose_loss(poses, gts, weights)
    jax.block_until_ready(loss)

    # Feature-major fast path (what a production producer should feed).
    poses_fm = poses.reshape(B * S, D).T
    gts_fm = gts.reshape(B * S, D).T
    loss_fm = rpmg_pose_loss_feature_major(poses_fm, gts_fm)
    jax.block_until_ready(loss_fm)

    ref = _reference_loss(poses, gts)
    assert jnp.allclose(loss, ref, rtol=1e-5, atol=1e-5), (loss, ref)
    assert jnp.allclose(loss_fm, ref, rtol=1e-5, atol=1e-5), (loss_fm, ref)
    print("KERNEL_OK")
</pallas_src>

<mosaic_0001>
module attributes {stable_mosaic.version = 11 : i64} {
  func.func @kernel(%arg0: i32, %arg1: memref<6x8x2xf32, #tpu.memory_space<vmem>>, %arg2: memref<6x8x2xf32, #tpu.memory_space<vmem>>, %arg3: memref<1x8x2xf32, #tpu.memory_space<vmem>>) attributes {dimension_semantics = [#tpu.dimension_semantics<parallel>], iteration_bounds = array<i64: 1>, scalar_prefetch = 0 : i64, scratch_operands = 0 : i64, tpu.core_type = #tpu.core_type<tc>, window_params = [{transform_indices = @transform_0, window_bounds = array<i64: 6, 8, 2>}, {transform_indices = @transform_1, window_bounds = array<i64: 6, 8, 2>}, {transform_indices = @transform_2, window_bounds = array<i64: 1, 8, 2>}]} {
    %c0 = arith.constant 0 : index
    %c0_0 = arith.constant 0 : index
    %c0_1 = arith.constant 0 : index
    %0 = vector.load %arg1[%c0, %c0_0, %c0_1] : memref<6x8x2xf32, #tpu.memory_space<vmem>>, vector<6x8x2xf32>
    %c0_2 = arith.constant 0 : index
    %c0_3 = arith.constant 0 : index
    %c0_4 = arith.constant 0 : index
    %1 = vector.load %arg2[%c0_2, %c0_3, %c0_4] : memref<6x8x2xf32, #tpu.memory_space<vmem>>, vector<6x8x2xf32>
    %2 = vector.extract_strided_slice %0 {offsets = [0, 0, 0], sizes = [3, 8, 2], strides = [1, 1, 1]} : vector<6x8x2xf32> to vector<3x8x2xf32>
    %3 = vector.extract_strided_slice %1 {offsets = [0, 0, 0], sizes = [3, 8, 2], strides = [1, 1, 1]} : vector<6x8x2xf32> to vector<3x8x2xf32>
    %4 = vector.extract_strided_slice %2 {offsets = [0, 0, 0], sizes = [1, 8, 2], strides = [1, 1, 1]} : vector<3x8x2xf32> to vector<1x8x2xf32>
    %5 = vector.shape_cast %4 : vector<1x8x2xf32> to vector<8x2xf32>
    %6 = math.sin %5 : vector<8x2xf32>
    %7 = vector.extract_strided_slice %2 {offsets = [0, 0, 0], sizes = [1, 8, 2], strides = [1, 1, 1]} : vector<3x8x2xf32> to vector<1x8x2xf32>
    %8 = vector.shape_cast %7 : vector<1x8x2xf32> to vector<8x2xf32>
    %9 = math.cos %8 : vector<8x2xf32>
    %10 = vector.extract_strided_slice %2 {offsets = [1, 0, 0], sizes = [1, 8, 2], strides = [1, 1, 1]} : vector<3x8x2xf32> to vector<1x8x2xf32>
    %11 = vector.shape_cast %10 : vector<1x8x2xf32> to vector<8x2xf32>
    %12 = math.sin %11 : vector<8x2xf32>
    %13 = vector.extract_strided_slice %2 {offsets = [1, 0, 0], sizes = [1, 8, 2], strides = [1, 1, 1]} : vector<3x8x2xf32> to vector<1x8x2xf32>
    %14 = vector.shape_cast %13 : vector<1x8x2xf32> to vector<8x2xf32>
    %15 = math.cos %14 : vector<8x2xf32>
    %16 = vector.extract_strided_slice %2 {offsets = [2, 0, 0], sizes = [1, 8, 2], strides = [1, 1, 1]} : vector<3x8x2xf32> to vector<1x8x2xf32>
    %17 = vector.shape_cast %16 : vector<1x8x2xf32> to vector<8x2xf32>
    %18 = math.sin %17 : vector<8x2xf32>
    %19 = vector.extract_strided_slice %2 {offsets = [2, 0, 0], sizes = [1, 8, 2], strides = [1, 1, 1]} : vector<3x8x2xf32> to vector<1x8x2xf32>
    %20 = vector.shape_cast %19 : vector<1x8x2xf32> to vector<8x2xf32>
    %21 = math.cos %20 : vector<8x2xf32>
    %22 = vector.extract_strided_slice %3 {offsets = [0, 0, 0], sizes = [1, 8, 2], strides = [1, 1, 1]} : vector<3x8x2xf32> to vector<1x8x2xf32>
    %23 = vector.shape_cast %22 : vector<1x8x2xf32> to vector<8x2xf32>
    %24 = math.sin %23 : vector<8x2xf32>
    %25 = vector.extract_strided_slice %3 {offsets = [0, 0, 0], sizes = [1, 8, 2], strides = [1, 1, 1]} : vector<3x8x2xf32> to vector<1x8x2xf32>
    %26 = vector.shape_cast %25 : vector<1x8x2xf32> to vector<8x2xf32>
    %27 = math.cos %26 : vector<8x2xf32>
    %28 = vector.extract_strided_slice %3 {offsets = [1, 0, 0], sizes = [1, 8, 2], strides = [1, 1, 1]} : vector<3x8x2xf32> to vector<1x8x2xf32>
    %29 = vector.shape_cast %28 : vector<1x8x2xf32> to vector<8x2xf32>
    %30 = math.sin %29 : vector<8x2xf32>
    %31 = vector.extract_strided_slice %3 {offsets = [1, 0, 0], sizes = [1, 8, 2], strides = [1, 1, 1]} : vector<3x8x2xf32> to vector<1x8x2xf32>
    %32 = vector.shape_cast %31 : vector<1x8x2xf32> to vector<8x2xf32>
    %33 = math.cos %32 : vector<8x2xf32>
    %34 = vector.extract_strided_slice %3 {offsets = [2, 0, 0], sizes = [1, 8, 2], strides = [1, 1, 1]} : vector<3x8x2xf32> to vector<1x8x2xf32>
    %35 = vector.shape_cast %34 : vector<1x8x2xf32> to vector<8x2xf32>
    %36 = math.sin %35 : vector<8x2xf32>
    %37 = vector.extract_strided_slice %3 {offsets = [2, 0, 0], sizes = [1, 8, 2], strides = [1, 1, 1]} : vector<3x8x2xf32> to vector<1x8x2xf32>
    %38 = vector.shape_cast %37 : vector<1x8x2xf32> to vector<8x2xf32>
    %39 = math.cos %38 : vector<8x2xf32>
    %40 = arith.mulf %15, %21 : vector<8x2xf32>
    %41 = arith.mulf %33, %39 : vector<8x2xf32>
    %42 = arith.subf %40, %41 : vector<8x2xf32>
    %43 = math.absf %42 : vector<8x2xf32>
    %44 = arith.mulf %6, %12 : vector<8x2xf32>
    %45 = arith.mulf %44, %21 : vector<8x2xf32>
    %46 = arith.mulf %9, %18 : vector<8x2xf32>
    %47 = arith.subf %45, %46 : vector<8x2xf32>
    %48 = arith.mulf %24, %30 : vector<8x2xf32>
    %49 = arith.mulf %48, %39 : vector<8x2xf32>
    %50 = arith.mulf %27, %36 : vector<8x2xf32>
    %51 = arith.subf %49, %50 : vector<8x2xf32>
    %52 = arith.subf %47, %51 : vector<8x2xf32>
    %53 = math.absf %52 : vector<8x2xf32>
    %54 = arith.addf %43, %53 : vector<8x2xf32>
    %55 = arith.mulf %9, %12 : vector<8x2xf32>
    %56 = arith.mulf %55, %21 : vector<8x2xf32>
    %57 = arith.mulf %6, %18 : vector<8x2xf32>
    %58 = arith.addf %56, %57 : vector<8x2xf32>
    %59 = arith.mulf %27, %30 : vector<8x2xf32>
    %60 = arith.mulf %59, %39 : vector<8x2xf32>
    %61 = arith.mulf %24, %36 : vector<8x2xf32>
    %62 = arith.addf %60, %61 : vector<8x2xf32>
    %63 = arith.subf %58, %62 : vector<8x2xf32>
    %64 = math.absf %63 : vector<8x2xf32>
    %65 = arith.addf %54, %64 : vector<8x2xf32>
    %66 = arith.mulf %15, %18 : vector<8x2xf32>
    %67 = arith.mulf %33, %36 : vector<8x2xf32>
    %68 = arith.subf %66, %67 : vector<8x2xf32>
    %69 = math.absf %68 : vector<8x2xf32>
    %70 = arith.addf %65, %69 : vector<8x2xf32>
    %71 = arith.mulf %6, %12 : vector<8x2xf32>
    %72 = arith.mulf %71, %18 : vector<8x2xf32>
    %73 = arith.mulf %9, %21 : vector<8x2xf32>
    %74 = arith.addf %72, %73 : vector<8x2xf32>
    %75 = arith.mulf %24, %30 : vector<8x2xf32>
    %76 = arith.mulf %75, %36 : vector<8x2xf32>
    %77 = arith.mulf %27, %39 : vector<8x2xf32>
    %78 = arith.addf %76, %77 : vector<8x2xf32>
    %79 = arith.subf %74, %78 : vector<8x2xf32>
    %80 = math.absf %79 : vector<8x2xf32>
    %81 = arith.addf %70, %80 : vector<8x2xf32>
    %82 = arith.mulf %9, %12 : vector<8x2xf32>
    %83 = arith.mulf %82, %18 : vector<8x2xf32>
    %84 = arith.mulf %6, %21 : vector<8x2xf32>
    %85 = arith.subf %83, %84 : vector<8x2xf32>
    %86 = arith.mulf %27, %30 : vector<8x2xf32>
    %87 = arith.mulf %86, %36 : vector<8x2xf32>
    %88 = arith.mulf %24, %39 : vector<8x2xf32>
    %89 = arith.subf %87, %88 : vector<8x2xf32>
    %90 = arith.subf %85, %89 : vector<8x2xf32>
    %91 = math.absf %90 : vector<8x2xf32>
    %92 = arith.addf %81, %91 : vector<8x2xf32>
    %cst = arith.constant 0.000000e+00 : f32
    %93 = vector.broadcast %cst : f32 to vector<8x2xf32>
    %94 = arith.subf %93, %12 : vector<8x2xf32>
    %cst_5 = arith.constant 0.000000e+00 : f32
    %95 = vector.broadcast %cst_5 : f32 to vector<8x2xf32>
    %96 = arith.subf %95, %30 : vector<8x2xf32>
    %97 = arith.subf %94, %96 : vector<8x2xf32>
    %98 = math.absf %97 : vector<8x2xf32>
    %99 = arith.addf %92, %98 : vector<8x2xf32>
    %100 = arith.mulf %6, %15 : vector<8x2xf32>
    %101 = arith.mulf %24, %33 : vector<8x2xf32>
    %102 = arith.subf %100, %101 : vector<8x2xf32>
    %103 = math.absf %102 : vector<8x2xf32>
    %104 = arith.addf %99, %103 : vector<8x2xf32>
    %105 = arith.mulf %9, %15 : vector<8x2xf32>
    %106 = arith.mulf %27, %33 : vector<8x2xf32>
    %107 = arith.subf %105, %106 : vector<8x2xf32>
    %108 = math.absf %107 : vector<8x2xf32>
    %109 = arith.addf %104, %108 : vector<8x2xf32>
    %110 = vector.extract_strided_slice %0 {offsets = [3, 0, 0], sizes = [1, 8, 2], strides = [1, 1, 1]} : vector<6x8x2xf32> to vector<1x8x2xf32>
    %111 = vector.shape_cast %110 : vector<1x8x2xf32> to vector<8x2xf32>
    %112 = vector.extract_strided_slice %1 {offsets = [3, 0, 0], sizes = [1, 8, 2], strides = [1, 1, 1]} : vector<6x8x2xf32> to vector<1x8x2xf32>
    %113 = vector.shape_cast %112 : vector<1x8x2xf32> to vector<8x2xf32>
    %114 = arith.subf %111, %113 : vector<8x2xf32>
    %115 = math.absf %114 : vector<8x2xf32>
    %116 = vector.extract_strided_slice %0 {offsets = [4, 0, 0], sizes = [1, 8, 2], strides = [1, 1, 1]} : vector<6x8x2xf32> to vector<1x8x2xf32>
    %117 = vector.shape_cast %116 : vector<1x8x2xf32> to vector<8x2xf32>
    %118 = vector.extract_strided_slice %1 {offsets = [4, 0, 0], sizes = [1, 8, 2], strides = [1, 1, 1]} : vector<6x8x2xf32> to vector<1x8x2xf32>
    %119 = vector.shape_cast %118 : vector<1x8x2xf32> to vector<8x2xf32>
    %120 = arith.subf %117, %119 : vector<8x2xf32>
    %121 = math.absf %120 : vector<8x2xf32>
    %122 = arith.addf %115, %121 : vector<8x2xf32>
    %123 = vector.extract_strided_slice %0 {offsets = [5, 0, 0], sizes = [1, 8, 2], strides = [1, 1, 1]} : vector<6x8x2xf32> to vector<1x8x2xf32>
    %124 = vector.shape_cast %123 : vector<1x8x2xf32> to vector<8x2xf32>
    %125 = vector.extract_strided_slice %1 {offsets = [5, 0, 0], sizes = [1, 8, 2], strides = [1, 1, 1]} : vector<6x8x2xf32> to vector<1x8x2xf32>
    %126 = vector.shape_cast %125 : vector<1x8x2xf32> to vector<8x2xf32>
    %127 = arith.subf %124, %126 : vector<8x2xf32>
    %128 = math.absf %127 : vector<8x2xf32>
    %129 = arith.addf %122, %128 : vector<8x2xf32>
    %cst_6 = arith.constant 0.694444418 : f32
    %130 = vector.broadcast %cst_6 : f32 to vector<8x2xf32>
    %131 = arith.mulf %130, %109 : vector<8x2xf32>
    %cst_7 = arith.constant 0.020833334 : f32
    %132 = vector.broadcast %cst_7 : f32 to vector<8x2xf32>
    %133 = arith.mulf %132, %129 : vector<8x2xf32>
    %134 = arith.addf %131, %133 : vector<8x2xf32>
    %c0_8 = arith.constant 0 : index
    %c0_9 = arith.constant 0 : index
    %c0_10 = arith.constant 0 : index
    %135 = vector.load %arg3[%c0_8, %c0_9, %c0_10] : memref<1x8x2xf32, #tpu.memory_space<vmem>>, vector<1x8x2xf32>
    %136 = vector.shape_cast %135 : vector<1x8x2xf32> to vector<8x2xf32>
    %137 = vector.shape_cast %134 : vector<8x2xf32> to vector<1x8x2xf32>
    tpu.vector_store %arg3[%c0_8, %c0_9, %c0_10], %137 {strides = array<i32>} : memref<1x8x2xf32, #tpu.memory_space<vmem>>, vector<1x8x2xf32>,
    return
  }
  func.func @transform_0(%arg0: i32) -> (i32, i32, i32) {
    %c0_i32 = arith.constant 0 : i32
    %c0_i32_0 = arith.constant 0 : i32
    %c0_i32_1 = arith.constant 0 : i32
    return %c0_i32, %c0_i32_0, %arg0 : i32, i32, i32
  }
  func.func @transform_1(%arg0: i32) -> (i32, i32, i32) {
    %c0_i32 = arith.constant 0 : i32
    %c0_i32_0 = arith.constant 0 : i32
    %c0_i32_1 = arith.constant 0 : i32
    return %c0_i32, %c0_i32_0, %arg0 : i32, i32, i32
  }
  func.func @transform_2(%arg0: i32) -> (i32, i32, i32) {
    %c0_i32 = arith.constant 0 : i32
    %c0_i32_0 = arith.constant 0 : i32
    %c0_i32_1 = arith.constant 0 : i32
    return %arg0, %c0_i32, %c0_i32_0 : i32, i32, i32
  }
}

</mosaic_0001>

<llo_original>
// kernel: tpu_custom_call.1
$region0: #{tpu_custom_call.1}
  #allocation0 [shape = 'u32[]', space=smem, size = 0x4, offset = 0x4, fixed_abs, tag = 'smem constant byte address 0x4 - core index']
  #allocation1 [shape = 'u32[144,128]{1,0:T(1,128)}', space=vmem, size = 0x12000, scoped, tag = 'internal scratch']
  %s0 = inlined_call_operand.vmem [shape: f32[6,8,2], index: 0, kind: input, shape index: {}]
  %s1 = inlined_call_operand.vmem [shape: f32[6,8,2], index: 1, kind: input, shape index: {}]
  %s2 = inlined_call_operand.vmem [shape: f32[1,8,2], index: 2, kind: output, shape index: {}]
  %s3 = sld [smem:[#allocation0]]
  $region18: #{tpu_custom_call.1} parent=0
    _
  %s5 = ssub.s32 1, %s3
  %s6 = scalar_select 0, %s5, %s3
  // Predicated region
  $region2: #{tpu_custom_call.1} parent=0 // pred_check
    _
  $region3: #{tpu_custom_call.1} parent=0 // pred_check_branch
    %8 = sbr.rel (0) target = $region5
  $region4: #{tpu_custom_call.1} parent=0 // pred_region
    _
  $region5: #{tpu_custom_call.1} parent=0 // pred_fallthru
    _
  // Predicated region
  $region6: #{tpu_custom_call.1} parent=0 // pred_check
    _
  $region7: #{tpu_custom_call.1} parent=0 // pred_check_branch
    %10 = sbr.rel (0) target = $region9
  $region8: #{tpu_custom_call.1} parent=0 // pred_region
    _
  $region9: #{tpu_custom_call.1} parent=0 // pred_fallthru
    _
  %v11 = vld [vmem:[%s0] sm:$0xff]
  %v12 = vld [vmem:[%s0 + $0x8] sm:$0xff]
  %v13 = vld [vmem:[%s0 + $0x10] sm:$0xff]
  %v14 = vld [vmem:[%s0 + $0x18] sm:$0xff]
  %v15 = vld [vmem:[%s0 + $0x20] sm:$0xff]
  %v16 = vld [vmem:[%s0 + $0x28] sm:$0xff]
  %v17 = vld [vmem:[%s1] sm:$0xff]
  %v18 = vld [vmem:[%s1 + $0x8] sm:$0xff]
  %v19 = vld [vmem:[%s1 + $0x10] sm:$0xff]
  %v20 = vld [vmem:[%s1 + $0x18] sm:$0xff]
  %v21 = vld [vmem:[%s1 + $0x20] sm:$0xff]
  %v22 = vld [vmem:[%s1 + $0x28] sm:$0xff]
  %v23 = vand.u32 2147483647, %v11
  %vm24 = vcmp.le.f32.partialorder %v23, 0.7853982
  %vm25 = vcmp.lt.s32.totalorder %v11, 0
  %v26 = vand.u32 %v11, 2139095040
  %v27 = vshrl.u32 %v26, 23
  %v28 = vsub.s32 %v27, 127
  %v29 = vand.u32 2147483647, %v11
  %v30 = vand.u32 %v29, 8388607
  %v31 = vor.u32 %v30, 8388608
  %v32 = vsub.s32 0, %v31
  %v33 = vadd.s32 %v28, 1
  %vm34 = vcmp.gt.s32.totalorder %v33, 0
  %v35 = vsel %vm34, %v33, 0
  %v36 = vshrl.u32 %v35, 5
  %v37 = vand.u32 %v35, 31
  %v38 = vsub.s32 32, %v37
  %v39 = vshrl.u32 683565275, %v38
  %v40 = vshll.u32 683565275, %v37
  %v41 = vshrl.u32 2475754826, %v38
  %v42 = vor.u32 %v40, %v41
  %v43 = vshll.u32 2475754826, %v37
  %v44 = vshrl.u32 2131351028, %v38
  %v45 = vor.u32 %v43, %v44
  %v46 = vshll.u32 2131351028, %v37
  %v47 = vshrl.u32 2102212464, %v38
  %v48 = vor.u32 %v46, %v47
  %v49 = vshll.u32 2102212464, %v37
  %v50 = vshrl.u32 920167782, %v38
  %v51 = vor.u32 %v49, %v50
  %v52 = vshll.u32 920167782, %v37
  %v53 = vshrl.u32 1326507024, %v38
  %v54 = vor.u32 %v52, %v53
  %vm55 = vcmp.lt.s32.totalorder %v36, 1
  %vm56 = vcmp.lt.s32.totalorder %v36, 2
  %vm57 = vcmp.lt.s32.totalorder %v36, 3
  %vm58 = vcmp.lt.s32.totalorder %v36, 4
  %v59 = vsel %vm55, %v39, %v42
  %v60 = vsel %vm58, %v48, 2102212464
  %v61 = vsel %vm57, %v45, %v60
  %v62 = vsel %vm56, %v59, %v61
  %v63 = vsel %vm55, %v42, %v45
  %v64 = vsel %vm58, %v51, 920167782
  %v65 = vsel %vm57, %v48, %v64
  %v66 = vsel %vm56, %v63, %v65
  %v67 = vsel %vm55, %v45, %v48
  %v68 = vsel %vm58, %v54, 1326507024
  %v69 = vsel %vm57, %v51, %v68
  %v70 = vsel %vm56, %v67, %v69
  %v71 = vshll.u32 %v31, 8
  %v72 = vmul.u32.u64.compose %v71, %v70
  %v73 = vextract.low.u32 %v72
  %v74 = vextract.high.u32 %v72
  %v75 = vmul.u32.u64.compose %v71, %v66
  %v76 = vextract.low.u32 %v75
  %v77 = vextract.high.u32 %v75
  %v78 = vmul.u32 %v71, %v62
  %v79 = vadd.s32 %v74, %v76
  %vm80 = vc.u32 %v74, %v76
  %v81 = vadd.s32 %v77, 1
  %v82 = vsel %vm80, %v81, %v77
  %v83 = vadd.s32 %v78, %v82
  %v84 = vadd.s32 %v83, 536870912
  %v85 = vshrl.u32 %v84, 30
  %v86 = vshll.u32 %v85, 30
  %v87 = vsub.s32 %v83, %v86
  %vm88 = vcmp.lt.s32.totalorder %v87, 0
  %v89 = vsub.s32 0, %v87
  %v90 = vsel %vm88, %v89, %v87
  %v91 = vclz %v90
  %v92 = vsub.s32 %v91, 2
  %vm93 = vcmp.gt.s32.totalorder 0, %v92
  %v94 = vsel %vm93, 0, %v92
  %v95 = vsub.s32 32, %v94
  %v96 = vshll.u32 %v87, %v94
  %v97 = vshrl.u32 %v79, %v95
  %v98 = vor.u32 %v96, %v97
  %v99 = vsub.s32 4294967266, %v94
  %v100 = vadd.s32 %v99, 127
  %v101 = vshll.u32 %v100, 23
  %v102 = vor.u32 4788187, %v101
  %v103 = vand.u32 2147483647, %v102
  %v105 = vcvt.s32.f32 %v98
  %v106 = vmul.f32 %v105, %v103
  %v107 = vxor.u32 %v106, 2147483648
  %v108 = vsel %vm25, %v107, %v106
  %v109 = vsub.s32 4, %v85
  %v110 = vsel %vm25, %v109, %v85
  %v111 = vsel %vm24, %v11, %v108
  %v112 = vsel %vm24, 0, %v110
  %v113 = vcosq.f32.pop %v111
  %v114 = vsinq.f32.pop %v111
  %vm115 = vweird.f32 %v11
  %v116 = vadd.s32 %v112, 3
  %v117 = vand.u32 %v116, 3
  %vm118 = vcmp.lt.s32.totalorder %v117, 2
  %vm119 = vcmp.eq.s32.totalorder %v117, 0
  %v120 = vxor.u32 %v114, 2147483648
  %v121 = vsel %vm119, %v113, %v120
  %vm122 = vcmp.eq.s32.totalorder %v117, 2
  %v123 = vxor.u32 %v113, 2147483648
  %v124 = vsel %vm122, %v123, %v114
  %v125 = vsel %vm118, %v121, %v124
  %v126 = vsel %vm115, nan, %v125
  %v127 = vand.u32 2147483647, %v11
  %vm128 = vcmp.le.f32.partialorder %v127, 0.7853982
  %vm129 = vcmp.lt.s32.totalorder %v11, 0
  %v130 = vand.u32 %v11, 2139095040
  %v131 = vshrl.u32 %v130, 23
  %v132 = vsub.s32 %v131, 127
  %v133 = vand.u32 2147483647, %v11
  %v134 = vand.u32 %v133, 8388607
  %v135 = vor.u32 %v134, 8388608
  %v136 = vsub.s32 0, %v135
  %v137 = vadd.s32 %v132, 1
  %vm138 = vcmp.gt.s32.totalorder %v137, 0
  %v139 = vsel %vm138, %v137, 0
  %v140 = vshrl.u32 %v139, 5
  %v141 = vand.u32 %v139, 31
  %v142 = vsub.s32 32, %v141
  %v143 = vshrl.u32 683565275, %v142
  %v144 = vshll.u32 683565275, %v141
  %v145 = vshrl.u32 2475754826, %v142
  %v146 = vor.u32 %v144, %v145
  %v147 = vshll.u32 2475754826, %v141
  %v148 = vshrl.u32 2131351028, %v142
  %v149 = vor.u32 %v147, %v148
  %v150 = vshll.u32 2131351028, %v141
  %v151 = vshrl.u32 2102212464, %v142
  %v152 = vor.u32 %v150, %v151
  %v153 = vshll.u32 2102212464, %v141
  %v154 = vshrl.u32 920167782, %v142
  %v155 = vor.u32 %v153, %v154
  %v156 = vshll.u32 920167782, %v141
  %v157 = vshrl.u32 1326507024, %v142
  %v158 = vor.u32 %v156, %v157
  %vm159 = vcmp.lt.s32.totalorder %v140, 1
  %vm160 = vcmp.lt.s32.totalorder %v140, 2
  %vm161 = vcmp.lt.s32.totalorder %v140, 3
  %vm162 = vcmp.lt.s32.totalorder %v140, 4
  %v163 = vsel %vm159, %v143, %v146
  %v164 = vsel %vm162, %v152, 2102212464
  %v165 = vsel %vm161, %v149, %v164
  %v166 = vsel %vm160, %v163, %v165
  %v167 = vsel %vm159, %v146, %v149
  %v168 = vsel %vm162, %v155, 920167782
  %v169 = vsel %vm161, %v152, %v168
  %v170 = vsel %vm160, %v167, %v169
  %v171 = vsel %vm159, %v149, %v152
  %v172 = vsel %vm162, %v158, 1326507024
  %v173 = vsel %vm161, %v155, %v172
  %v174 = vsel %vm160, %v171, %v173
  %v175 = vshll.u32 %v135, 8
  %v176 = vmul.u32.u64.compose %v175, %v174
  %v177 = vextract.low.u32 %v176
  %v178 = vextract.high.u32 %v176
  %v179 = vmul.u32.u64.compose %v175, %v170
  %v180 = vextract.low.u32 %v179
  %v181 = vextract.high.u32 %v179
  %v182 = vmul.u32 %v175, %v166
  %v183 = vadd.s32 %v178, %v180
  %vm184 = vc.u32 %v178, %v180
  %v185 = vadd.s32 %v181, 1
  %v186 = vsel %vm184, %v185, %v181
  %v187 = vadd.s32 %v182, %v186
  %v188 = vadd.s32 %v187, 536870912
  %v189 = vshrl.u32 %v188, 30
  %v190 = vshll.u32 %v189, 30
  %v191 = vsub.s32 %v187, %v190
  %vm192 = vcmp.lt.s32.totalorder %v191, 0
  %v193 = vsub.s32 0, %v191
  %v194 = vsel %vm192, %v193, %v191
  %v195 = vclz %v194
  %v196 = vsub.s32 %v195, 2
  %vm197 = vcmp.gt.s32.totalorder 0, %v196
  %v198 = vsel %vm197, 0, %v196
  %v199 = vsub.s32 32, %v198
  %v200 = vshll.u32 %v191, %v198
  %v201 = vshrl.u32 %v183, %v199
  %v202 = vor.u32 %v200, %v201
  %v203 = vsub.s32 4294967266, %v198
  %v204 = vadd.s32 %v203, 127
  %v205 = vshll.u32 %v204, 23
  %v206 = vor.u32 4788187, %v205
  %v207 = vand.u32 2147483647, %v206
  %v209 = vcvt.s32.f32 %v202
  %v210 = vmul.f32 %v209, %v207
  %v211 = vxor.u32 %v210, 2147483648
  %v212 = vsel %vm129, %v211, %v210
  %v213 = vsub.s32 4, %v189
  %v214 = vsel %vm129, %v213, %v189
  %v215 = vsel %vm128, %v11, %v212
  %v216 = vsel %vm128, 0, %v214
  %v217 = vcosq.f32.pop %v215
  %v218 = vsinq.f32.pop %v215
  %vm219 = vweird.f32 %v11
  %v220 = vand.u32 %v216, 3
  %vm221 = vcmp.lt.s32.totalorder %v220, 2
  %vm222 = vcmp.eq.s32.totalorder %v220, 0
  %v223 = vxor.u32 %v218, 2147483648
  %v224 = vsel %vm222, %v217, %v223
  %vm225 = vcmp.eq.s32.totalorder %v220, 2
  %v226 = vxor.u32 %v217, 2147483648
  %v227 = vsel %vm225, %v226, %v218
  %v228 = vsel %vm221, %v224, %v227
  %v229 = vsel %vm219, nan, %v228
  %v230 = vand.u32 2147483647, %v12
  %vm231 = vcmp.le.f32.partialorder %v230, 0.7853982
  %vm232 = vcmp.lt.s32.totalorder %v12, 0
  %v233 = vand.u32 %v12, 2139095040
  %v234 = vshrl.u32 %v233, 23
  %v235 = vsub.s32 %v234, 127
  %v236 = vand.u32 2147483647, %v12
  %v237 = vand.u32 %v236, 8388607
  %v238 = vor.u32 %v237, 8388608
  %v239 = vsub.s32 0, %v238
  %v240 = vadd.s32 %v235, 1
  %vm241 = vcmp.gt.s32.totalorder %v240, 0
  %v242 = vsel %vm241, %v240, 0
  %v243 = vshrl.u32 %v242, 5
  %v244 = vand.u32 %v242, 31
  %v245 = vsub.s32 32, %v244
  %v246 = vshrl.u32 683565275, %v245
  %v247 = vshll.u32 683565275, %v244
  %v248 = vshrl.u32 2475754826, %v245
  %v249 = vor.u32 %v247, %v248
  %v250 = vshll.u32 2475754826, %v244
  %v251 = vshrl.u32 2131351028, %v245
  %v252 = vor.u32 %v250, %v251
  %v253 = vshll.u32 2131351028, %v244
  %v254 = vshrl.u32 2102212464, %v245
  %v255 = vor.u32 %v253, %v254
  %v256 = vshll.u32 2102212464, %v244
  %v257 = vshrl.u32 920167782, %v245
  %v258 = vor.u32 %v256, %v257
  %v259 = vshll.u32 920167782, %v244
  %v260 = vshrl.u32 1326507024, %v245
  %v261 = vor.u32 %v259, %v260
  %vm262 = vcmp.lt.s32.totalorder %v243, 1
  %vm263 = vcmp.lt.s32.totalorder %v243, 2
  %vm264 = vcmp.lt.s32.totalorder %v243, 3
  %vm265 = vcmp.lt.s32.totalorder %v243, 4
  %v266 = vsel %vm262, %v246, %v249
  %v267 = vsel %vm265, %v255, 2102212464
  %v268 = vsel %vm264, %v252, %v267
  %v269 = vsel %vm263, %v266, %v268
  %v270 = vsel %vm262, %v249, %v252
  %v271 = vsel %vm265, %v258, 920167782
  %v272 = vsel %vm264, %v255, %v271
  %v273 = vsel %vm263, %v270, %v272
  %v274 = vsel %vm262, %v252, %v255
  %v275 = vsel %vm265, %v261, 1326507024
  %v276 = vsel %vm264, %v258, %v275
  %v277 = vsel %vm263, %v274, %v276
  %v278 = vshll.u32 %v238, 8
  %v279 = vmul.u32.u64.compose %v278, %v277
  %v280 = vextract.low.u32 %v279
  %v281 = vextract.high.u32 %v279
  %v282 = vmul.u32.u64.compose %v278, %v273
  %v283 = vextract.low.u32 %v282
  %v284 = vextract.high.u32 %v282
  %v285 = vmul.u32 %v278, %v269
  %v286 = vadd.s32 %v281, %v283
  %vm287 = vc.u32 %v281, %v283
  %v288 = vadd.s32 %v284, 1
  %v289 = vsel %vm287, %v288, %v284
  %v290 = vadd.s32 %v285, %v289
  %v291 = vadd.s32 %v290, 536870912
  %v292 = vshrl.u32 %v291, 30
  %v293 = vshll.u32 %v292, 30
  %v294 = vsub.s32 %v290, %v293
  %vm295 = vcmp.lt.s32.totalorder %v294, 0
  %v296 = vsub.s32 0, %v294
  %v297 = vsel %vm295, %v296, %v294
  %v298 = vclz %v297
  %v299 = vsub.s32 %v298, 2
  %vm300 = vcmp.gt.s32.totalorder 0, %v299
  %v301 = vsel %vm300, 0, %v299
  %v302 = vsub.s32 32, %v301
  %v303 = vshll.u32 %v294, %v301
  %v304 = vshrl.u32 %v286, %v302
  %v305 = vor.u32 %v303, %v304
  %v306 = vsub.s32 4294967266, %v301
  %v307 = vadd.s32 %v306, 127
  %v308 = vshll.u32 %v307, 23
  %v309 = vor.u32 4788187, %v308
  %v310 = vand.u32 2147483647, %v309
  %v312 = vcvt.s32.f32 %v305
  %v313 = vmul.f32 %v312, %v310
  %v314 = vxor.u32 %v313, 2147483648
  %v315 = vsel %vm232, %v314, %v313
  %v316 = vsub.s32 4, %v292
  %v317 = vsel %vm232, %v316, %v292
  %v318 = vsel %vm231, %v12, %v315
  %v319 = vsel %vm231, 0, %v317
  %v320 = vcosq.f32.pop %v318
  %v321 = vsinq.f32.pop %v318
  %vm322 = vweird.f32 %v12
  %v323 = vadd.s32 %v319, 3
  %v324 = vand.u32 %v323, 3
  %vm325 = vcmp.lt.s32.totalorder %v324, 2
  %vm326 = vcmp.eq.s32.totalorder %v324, 0
  %v327 = vxor.u32 %v321, 2147483648
  %v328 = vsel %vm326, %v320, %v327
  %vm329 = vcmp.eq.s32.totalorder %v324, 2
  %v330 = vxor.u32 %v320, 2147483648
  %v331 = vsel %vm329, %v330, %v321
  %v332 = vsel %vm325, %v328, %v331
  %v333 = vsel %vm322, nan, %v332
  %v334 = vand.u32 2147483647, %v12
  %vm335 = vcmp.le.f32.partialorder %v334, 0.7853982
  %vm336 = vcmp.lt.s32.totalorder %v12, 0
  %v337 = vand.u32 %v12, 2139095040
  %v338 = vshrl.u32 %v337, 23
  %v339 = vsub.s32 %v338, 127
  %v340 = vand.u32 2147483647, %v12
  %v341 = vand.u32 %v340, 8388607
  %v342 = vor.u32 %v341, 8388608
  %v343 = vsub.s32 0, %v342
  %v344 = vadd.s32 %v339, 1
  %vm345 = vcmp.gt.s32.totalorder %v344, 0
  %v346 = vsel %vm345, %v344, 0
  %v347 = vshrl.u32 %v346, 5
  %v348 = vand.u32 %v346, 31
  %v349 = vsub.s32 32, %v348
  %v350 = vshrl.u32 683565275, %v349
  %v351 = vshll.u32 683565275, %v348
  %v352 = vshrl.u32 2475754826, %v349
  %v353 = vor.u32 %v351, %v352
  %v354 = vshll.u32 2475754826, %v348
  %v355 = vshrl.u32 2131351028, %v349
  %v356 = vor.u32 %v354, %v355
  %v357 = vshll.u32 2131351028, %v348
  %v358 = vshrl.u32 2102212464, %v349
  %v359 = vor.u32 %v357, %v358
  %v360 = vshll.u32 2102212464, %v348
  %v361 = vshrl.u32 920167782, %v349
  %v362 = vor.u32 %v360, %v361
  %v363 = vshll.u32 920167782, %v348
  %v364 = vshrl.u32 1326507024, %v349
  %v365 = vor.u32 %v363, %v364
  %vm366 = vcmp.lt.s32.totalorder %v347, 1
  %vm367 = vcmp.lt.s32.totalorder %v347, 2
  %vm368 = vcmp.lt.s32.totalorder %v347, 3
  %vm369 = vcmp.lt.s32.totalorder %v347, 4
  %v370 = vsel %vm366, %v350, %v353
  %v371 = vsel %vm369, %v359, 2102212464
  %v372 = vsel %vm368, %v356, %v371
  %v373 = vsel %vm367, %v370, %v372
  %v374 = vsel %vm366, %v353, %v356
  %v375 = vsel %vm369, %v362, 920167782
  %v376 = vsel %vm368, %v359, %v375
  %v377 = vsel %vm367, %v374, %v376
  %v378 = vsel %vm366, %v356, %v359
  %v379 = vsel %vm369, %v365, 1326507024
  %v380 = vsel %vm368, %v362, %v379
  %v381 = vsel %vm367, %v378, %v380
  %v382 = vshll.u32 %v342, 8
  %v383 = vmul.u32.u64.compose %v382, %v381
  %v384 = vextract.low.u32 %v383
  %v385 = vextract.high.u32 %v383
  %v386 = vmul.u32.u64.compose %v382, %v377
  %v387 = vextract.low.u32 %v386
  %v388 = vextract.high.u32 %v386
  %v389 = vmul.u32 %v382, %v373
  %v390 = vadd.s32 %v385, %v387
  %vm391 = vc.u32 %v385, %v387
  %v392 = vadd.s32 %v388, 1
  %v393 = vsel %vm391, %v392, %v388
  %v394 = vadd.s32 %v389, %v393
  %v395 = vadd.s32 %v394, 536870912
  %v396 = vshrl.u32 %v395, 30
  %v397 = vshll.u32 %v396, 30
  %v398 = vsub.s32 %v394, %v397
  %vm399 = vcmp.lt.s32.totalorder %v398, 0
  %v400 = vsub.s32 0, %v398
  %v401 = vsel %vm399, %v400, %v398
  %v402 = vclz %v401
  %v403 = vsub.s32 %v402, 2
  %vm404 = vcmp.gt.s32.totalorder 0, %v403
  %v405 = vsel %vm404, 0, %v403
  %v406 = vsub.s32 32, %v405
  %v407 = vshll.u32 %v398, %v405
  %v408 = vshrl.u32 %v390, %v406
  %v409 = vor.u32 %v407, %v408
  %v410 = vsub.s32 4294967266, %v405
  %v411 = vadd.s32 %v410, 127
  %v412 = vshll.u32 %v411, 23
  %v413 = vor.u32 4788187, %v412
  %v414 = vand.u32 2147483647, %v413
  %v416 = vcvt.s32.f32 %v409
  %v417 = vmul.f32 %v416, %v414
  %v418 = vxor.u32 %v417, 2147483648
  %v419 = vsel %vm336, %v418, %v417
  %v420 = vsub.s32 4, %v396
  %v421 = vsel %vm336, %v420, %v396
  %v422 = vsel %vm335, %v12, %v419
  %v423 = vsel %vm335, 0, %v421
  %v424 = vcosq.f32.pop %v422
  %v425 = vsinq.f32.pop %v422
  %vm426 = vweird.f32 %v12
  %v427 = vand.u32 %v423, 3
  %vm428 = vcmp.lt.s32.totalorder %v427, 2
  %vm429 = vcmp.eq.s32.totalorder %v427, 0
  %v430 = vxor.u32 %v425, 2147483648
  %v431 = vsel %vm429, %v424, %v430
  %vm432 = vcmp.eq.s32.totalorder %v427, 2
  %v433 = vxor.u32 %v424, 2147483648
  %v434 = vsel %vm432, %v433, %v425
  %v435 = vsel %vm428, %v431, %v434
  %v436 = vsel %vm426, nan, %v435
  %v437 = vand.u32 2147483647, %v13
  %vm438 = vcmp.le.f32.partialorder %v437, 0.7853982
  %vm439 = vcmp.lt.s32.totalorder %v13, 0
  %v440 = vand.u32 %v13, 2139095040
  %v441 = vshrl.u32 %v440, 23
  %v442 = vsub.s32 %v441, 127
  %v443 = vand.u32 2147483647, %v13
  %v444 = vand.u32 %v443, 8388607
  %v445 = vor.u32 %v444, 8388608
  %v446 = vsub.s32 0, %v445
  %v447 = vadd.s32 %v442, 1
  %vm448 = vcmp.gt.s32.totalorder %v447, 0
  %v449 = vsel %vm448, %v447, 0
  %v450 = vshrl.u32 %v449, 5
  %v451 = vand.u32 %v449, 31
  %v452 = vsub.s32 32, %v451
  %v453 = vshrl.u32 683565275, %v452
  %v454 = vshll.u32 683565275, %v451
  %v455 = vshrl.u32 2475754826, %v452
  %v456 = vor.u32 %v454, %v455
  %v457 = vshll.u32 2475754826, %v451
  %v458 = vshrl.u32 2131351028, %v452
  %v459 = vor.u32 %v457, %v458
  %v460 = vshll.u32 2131351028, %v451
  %v461 = vshrl.u32 2102212464, %v452
  %v462 = vor.u32 %v460, %v461
  %v463 = vshll.u32 2102212464, %v451
  %v464 = vshrl.u32 920167782, %v452
  %v465 = vor.u32 %v463, %v464
  %v466 = vshll.u32 920167782, %v451
  %v467 = vshrl.u32 1326507024, %v452
  %v468 = vor.u32 %v466, %v467
  %vm469 = vcmp.lt.s32.totalorder %v450, 1
  %vm470 = vcmp.lt.s32.totalorder %v450, 2
  %vm471 = vcmp.lt.s32.totalorder %v450, 3
  %vm472 = vcmp.lt.s32.totalorder %v450, 4
  %v473 = vsel %vm469, %v453, %v456
  %v474 = vsel %vm472, %v462, 2102212464
  %v475 = vsel %vm471, %v459, %v474
  %v476 = vsel %vm470, %v473, %v475
  %v477 = vsel %vm469, %v456, %v459
  %v478 = vsel %vm472, %v465, 920167782
  %v479 = vsel %vm471, %v462, %v478
  %v480 = vsel %vm470, %v477, %v479
  %v481 = vsel %vm469, %v459, %v462
  %v482 = vsel %vm472, %v468, 1326507024
  %v483 = vsel %vm471, %v465, %v482
  %v484 = vsel %vm470, %v481, %v483
  %v485 = vshll.u32 %v445, 8
  %v486 = vmul.u32.u64.compose %v485, %v484
  %v487 = vextract.low.u32 %v486
  %v488 = vextract.high.u32 %v486
  %v489 = vmul.u32.u64.compose %v485, %v480
  %v490 = vextract.low.u32 %v489
  %v491 = vextract.high.u32 %v489
  %v492 = vmul.u32 %v485, %v476
  %v493 = vadd.s32 %v488, %v490
  %vm494 = vc.u32 %v488, %v490
  %v495 = vadd.s32 %v491, 1
  %v496 = vsel %vm494, %v495, %v491
  %v497 = vadd.s32 %v492, %v496
  %v498 = vadd.s32 %v497, 536870912
  %v499 = vshrl.u32 %v498, 30
  %v500 = vshll.u32 %v499, 30
  %v501 = vsub.s32 %v497, %v500
  %vm502 = vcmp.lt.s32.totalorder %v501, 0
  %v503 = vsub.s32 0, %v501
  %v504 = vsel %vm502, %v503, %v501
  %v505 = vclz %v504
  %v506 = vsub.s32 %v505, 2
  %vm507 = vcmp.gt.s32.totalorder 0, %v506
  %v508 = vsel %vm507, 0, %v506
  %v509 = vsub.s32 32, %v508
  %v510 = vshll.u32 %v501, %v508
  %v511 = vshrl.u32 %v493, %v509
  %v512 = vor.u32 %v510, %v511
  %v513 = vsub.s32 4294967266, %v508
  %v514 = vadd.s32 %v513, 127
  %v515 = vshll.u32 %v514, 23
  %v516 = vor.u32 4788187, %v515
  %v517 = vand.u32 2147483647, %v516
  %v519 = vcvt.s32.f32 %v512
  %v520 = vmul.f32 %v519, %v517
  %v521 = vxor.u32 %v520, 2147483648
  %v522 = vsel %vm439, %v521, %v520
  %v523 = vsub.s32 4, %v499
  %v524 = vsel %vm439, %v523, %v499
  %v525 = vsel %vm438, %v13, %v522
  %v526 = vsel %vm438, 0, %v524
  %v527 = vcosq.f32.pop %v525
  %v528 = vsinq.f32.pop %v525
  %vm529 = vweird.f32 %v13
  %v530 = vadd.s32 %v526, 3
  %v531 = vand.u32 %v530, 3
  %vm532 = vcmp.lt.s32.totalorder %v531, 2
  %vm533 = vcmp.eq.s32.totalorder %v531, 0
  %v534 = vxor.u32 %v528, 2147483648
  %v535 = vsel %vm533, %v527, %v534
  %vm536 = vcmp.eq.s32.totalorder %v531, 2
  %v537 = vxor.u32 %v527, 2147483648
  %v538 = vsel %vm536, %v537, %v528
  %v539 = vsel %vm532, %v535, %v538
  %v540 = vsel %vm529, nan, %v539
  %v541 = vand.u32 2147483647, %v13
  %vm542 = vcmp.le.f32.partialorder %v541, 0.7853982
  %vm543 = vcmp.lt.s32.totalorder %v13, 0
  %v544 = vand.u32 %v13, 2139095040
  %v545 = vshrl.u32 %v544, 23
  %v546 = vsub.s32 %v545, 127
  %v547 = vand.u32 2147483647, %v13
  %v548 = vand.u32 %v547, 8388607
  %v549 = vor.u32 %v548, 8388608
  %v550 = vsub.s32 0, %v549
  %v551 = vadd.s32 %v546, 1
  %vm552 = vcmp.gt.s32.totalorder %v551, 0
  %v553 = vsel %vm552, %v551, 0
  %v554 = vshrl.u32 %v553, 5
  %v555 = vand.u32 %v553, 31
  %v556 = vsub.s32 32, %v555
  %v557 = vshrl.u32 683565275, %v556
  %v558 = vshll.u32 683565275, %v555
  %v559 = vshrl.u32 2475754826, %v556
  %v560 = vor.u32 %v558, %v559
  %v561 = vshll.u32 2475754826, %v555
  %v562 = vshrl.u32 2131351028, %v556
  %v563 = vor.u32 %v561, %v562
  %v564 = vshll.u32 2131351028, %v555
  %v565 = vshrl.u32 2102212464, %v556
  %v566 = vor.u32 %v564, %v565
  %v567 = vshll.u32 2102212464, %v555
  %v568 = vshrl.u32 920167782, %v556
  %v569 = vor.u32 %v567, %v568
  %v570 = vshll.u32 920167782, %v555
  %v571 = vshrl.u32 1326507024, %v556
  %v572 = vor.u32 %v570, %v571
  %vm573 = vcmp.lt.s32.totalorder %v554, 1
  %vm574 = vcmp.lt.s32.totalorder %v554, 2
  %vm575 = vcmp.lt.s32.totalorder %v554, 3
  %vm576 = vcmp.lt.s32.totalorder %v554, 4
  %v577 = vsel %vm573, %v557, %v560
  %v578 = vsel %vm576, %v566, 2102212464
  %v579 = vsel %vm575, %v563, %v578
  %v580 = vsel %vm574, %v577, %v579
  %v581 = vsel %vm573, %v560, %v563
  %v582 = vsel %vm576, %v569, 920167782
  %v583 = vsel %vm575, %v566, %v582
  %v584 = vsel %vm574, %v581, %v583
  %v585 = vsel %vm573, %v563, %v566
  %v586 = vsel %vm576, %v572, 1326507024
  %v587 = vsel %vm575, %v569, %v586
  %v588 = vsel %vm574, %v585, %v587
  %v589 = vshll.u32 %v549, 8
  %v590 = vmul.u32.u64.compose %v589, %v588
  %v591 = vextract.low.u32 %v590
  %v592 = vextract.high.u32 %v590
  %v593 = vmul.u32.u64.compose %v589, %v584
  %v594 = vextract.low.u32 %v593
  %v595 = vextract.high.u32 %v593
  %v596 = vmul.u32 %v589, %v580
  %v597 = vadd.s32 %v592, %v594
  %vm598 = vc.u32 %v592, %v594
  %v599 = vadd.s32 %v595, 1
  %v600 = vsel %vm598, %v599, %v595
  %v601 = vadd.s32 %v596, %v600
  %v602 = vadd.s32 %v601, 536870912
  %v603 = vshrl.u32 %v602, 30
  %v604 = vshll.u32 %v603, 30
  %v605 = vsub.s32 %v601, %v604
  %vm606 = vcmp.lt.s32.totalorder %v605, 0
  %v607 = vsub.s32 0, %v605
  %v608 = vsel %vm606, %v607, %v605
  %v609 = vclz %v608
  %v610 = vsub.s32 %v609, 2
  %vm611 = vcmp.gt.s32.totalorder 0, %v610
  %v612 = vsel %vm611, 0, %v610
  %v613 = vsub.s32 32, %v612
  %v614 = vshll.u32 %v605, %v612
  %v615 = vshrl.u32 %v597, %v613
  %v616 = vor.u32 %v614, %v615
  %v617 = vsub.s32 4294967266, %v612
  %v618 = vadd.s32 %v617, 127
  %v619 = vshll.u32 %v618, 23
  %v620 = vor.u32 4788187, %v619
  %v621 = vand.u32 2147483647, %v620
  %v623 = vcvt.s32.f32 %v616
  %v624 = vmul.f32 %v623, %v621
  %v625 = vxor.u32 %v624, 2147483648
  %v626 = vsel %vm543, %v625, %v624
  %v627 = vsub.s32 4, %v603
  %v628 = vsel %vm543, %v627, %v603
  %v629 = vsel %vm542, %v13, %v626
  %v630 = vsel %vm542, 0, %v628
  %v631 = vcosq.f32.pop %v629
  %v632 = vsinq.f32.pop %v629
  %vm633 = vweird.f32 %v13
  %v634 = vand.u32 %v630, 3
  %vm635 = vcmp.lt.s32.totalorder %v634, 2
  %vm636 = vcmp.eq.s32.totalorder %v634, 0
  %v637 = vxor.u32 %v632, 2147483648
  %v638 = vsel %vm636, %v631, %v637
  %vm639 = vcmp.eq.s32.totalorder %v634, 2
  %v640 = vxor.u32 %v631, 2147483648
  %v641 = vsel %vm639, %v640, %v632
  %v642 = vsel %vm635, %v638, %v641
  %v643 = vsel %vm633, nan, %v642
  %v644 = vand.u32 2147483647, %v17
  %vm645 = vcmp.le.f32.partialorder %v644, 0.7853982
  %vm646 = vcmp.lt.s32.totalorder %v17, 0
  %v647 = vand.u32 %v17, 2139095040
  %v648 = vshrl.u32 %v647, 23
  %v649 = vsub.s32 %v648, 127
  %v650 = vand.u32 2147483647, %v17
  %v651 = vand.u32 %v650, 8388607
  %v652 = vor.u32 %v651, 8388608
  %v653 = vsub.s32 0, %v652
  %v654 = vadd.s32 %v649, 1
  %vm655 = vcmp.gt.s32.totalorder %v654, 0
  %v656 = vsel %vm655, %v654, 0
  %v657 = vshrl.u32 %v656, 5
  %v658 = vand.u32 %v656, 31
  %v659 = vsub.s32 32, %v658
  %v660 = vshrl.u32 683565275, %v659
  %v661 = vshll.u32 683565275, %v658
  %v662 = vshrl.u32 2475754826, %v659
  %v663 = vor.u32 %v661, %v662
  %v664 = vshll.u32 2475754826, %v658
  %v665 = vshrl.u32 2131351028, %v659
  %v666 = vor.u32 %v664, %v665
  %v667 = vshll.u32 2131351028, %v658
  %v668 = vshrl.u32 2102212464, %v659
  %v669 = vor.u32 %v667, %v668
  %v670 = vshll.u32 2102212464, %v658
  %v671 = vshrl.u32 920167782, %v659
  %v672 = vor.u32 %v670, %v671
  %v673 = vshll.u32 920167782, %v658
  %v674 = vshrl.u32 1326507024, %v659
  %v675 = vor.u32 %v673, %v674
  %vm676 = vcmp.lt.s32.totalorder %v657, 1
  %vm677 = vcmp.lt.s32.totalorder %v657, 2
  %vm678 = vcmp.lt.s32.totalorder %v657, 3
  %vm679 = vcmp.lt.s32.totalorder %v657, 4
  %v680 = vsel %vm676, %v660, %v663
  %v681 = vsel %vm679, %v669, 2102212464
  %v682 = vsel %vm678, %v666, %v681
  %v683 = vsel %vm677, %v680, %v682
  %v684 = vsel %vm676, %v663, %v666
  %v685 = vsel %vm679, %v672, 920167782
  %v686 = vsel %vm678, %v669, %v685
  %v687 = vsel %vm677, %v684, %v686
  %v688 = vsel %vm676, %v666, %v669
  %v689 = vsel %vm679, %v675, 1326507024
  %v690 = vsel %vm678, %v672, %v689
  %v691 = vsel %vm677, %v688, %v690
  %v692 = vshll.u32 %v652, 8
  %v693 = vmul.u32.u64.compose %v692, %v691
  %v694 = vextract.low.u32 %v693
  %v695 = vextract.high.u32 %v693
  %v696 = vmul.u32.u64.compose %v692, %v687
  %v697 = vextract.low.u32 %v696
  %v698 = vextract.high.u32 %v696
  %v699 = vmul.u32 %v692, %v683
  %v700 = vadd.s32 %v695, %v697
  %vm701 = vc.u32 %v695, %v697
  %v702 = vadd.s32 %v698, 1
  %v703 = vsel %vm701, %v702, %v698
  %v704 = vadd.s32 %v699, %v703
  %v705 = vadd.s32 %v704, 536870912
  %v706 = vshrl.u32 %v705, 30
  %v707 = vshll.u32 %v706, 30
  %v708 = vsub.s32 %v704, %v707
  %vm709 = vcmp.lt.s32.totalorder %v708, 0
  %v710 = vsub.s32 0, %v708
  %v711 = vsel %vm709, %v710, %v708
  %v712 = vclz %v711
  %v713 = vsub.s32 %v712, 2
  %vm714 = vcmp.gt.s32.totalorder 0, %v713
  %v715 = vsel %vm714, 0, %v713
  %v716 = vsub.s32 32, %v715
  %v717 = vshll.u32 %v708, %v715
  %v718 = vshrl.u32 %v700, %v716
  %v719 = vor.u32 %v717, %v718
  %v720 = vsub.s32 4294967266, %v715
  %v721 = vadd.s32 %v720, 127
  %v722 = vshll.u32 %v721, 23
  %v723 = vor.u32 4788187, %v722
  %v724 = vand.u32 2147483647, %v723
  %v726 = vcvt.s32.f32 %v719
  %v727 = vmul.f32 %v726, %v724
  %v728 = vxor.u32 %v727, 2147483648
  %v729 = vsel %vm646, %v728, %v727
  %v730 = vsub.s32 4, %v706
  %v731 = vsel %vm646, %v730, %v706
  %v732 = vsel %vm645, %v17, %v729
  %v733 = vsel %vm645, 0, %v731
  %v734 = vcosq.f32.pop %v732
  %v735 = vsinq.f32.pop %v732
  %vm736 = vweird.f32 %v17
  %v737 = vadd.s32 %v733, 3
  %v738 = vand.u32 %v737, 3
  %vm739 = vcmp.lt.s32.totalorder %v738, 2
  %vm740 = vcmp.eq.s32.totalorder %v738, 0
  %v741 = vxor.u32 %v735, 2147483648
  %v742 = vsel %vm740, %v734, %v741
  %vm743 = vcmp.eq.s32.totalorder %v738, 2
  %v744 = vxor.u32 %v734, 2147483648
  %v745 = vsel %vm743, %v744, %v735
  %v746 = vsel %vm739, %v742, %v745
  %v747 = vsel %vm736, nan, %v746
  %v748 = vand.u32 2147483647, %v17
  %vm749 = vcmp.le.f32.partialorder %v748, 0.7853982
  %vm750 = vcmp.lt.s32.totalorder %v17, 0
  %v751 = vand.u32 %v17, 2139095040
  %v752 = vshrl.u32 %v751, 23
  %v753 = vsub.s32 %v752, 127
  %v754 = vand.u32 2147483647, %v17
  %v755 = vand.u32 %v754, 8388607
  %v756 = vor.u32 %v755, 8388608
  %v757 = vsub.s32 0, %v756
  %v758 = vadd.s32 %v753, 1
  %vm759 = vcmp.gt.s32.totalorder %v758, 0
  %v760 = vsel %vm759, %v758, 0
  %v761 = vshrl.u32 %v760, 5
  %v762 = vand.u32 %v760, 31
  %v763 = vsub.s32 32, %v762
  %v764 = vshrl.u32 683565275, %v763
  %v765 = vshll.u32 683565275, %v762
  %v766 = vshrl.u32 2475754826, %v763
  %v767 = vor.u32 %v765, %v766
  %v768 = vshll.u32 2475754826, %v762
  %v769 = vshrl.u32 2131351028, %v763
  %v770 = vor.u32 %v768, %v769
  %v771 = vshll.u32 2131351028, %v762
  %v772 = vshrl.u32 2102212464, %v763
  %v773 = vor.u32 %v771, %v772
  %v774 = vshll.u32 2102212464, %v762
  %v775 = vshrl.u32 920167782, %v763
  %v776 = vor.u32 %v774, %v775
  %v777 = vshll.u32 920167782, %v762
  %v778 = vshrl.u32 1326507024, %v763
  %v779 = vor.u32 %v777, %v778
  %vm780 = vcmp.lt.s32.totalorder %v761, 1
  %vm781 = vcmp.lt.s32.totalorder %v761, 2
  %vm782 = vcmp.lt.s32.totalorder %v761, 3
  %vm783 = vcmp.lt.s32.totalorder %v761, 4
  %v784 = vsel %vm780, %v764, %v767
  %v785 = vsel %vm783, %v773, 2102212464
  %v786 = vsel %vm782, %v770, %v785
  %v787 = vsel %vm781, %v784, %v786
  %v788 = vsel %vm780, %v767, %v770
  %v789 = vsel %vm783, %v776, 920167782
  %v790 = vsel %vm782, %v773, %v789
  %v791 = vsel %vm781, %v788, %v790
  %v792 = vsel %vm780, %v770, %v773
  %v793 = vsel %vm783, %v779, 1326507024
  %v794 = vsel %vm782, %v776, %v793
  %v795 = vsel %vm781, %v792, %v794
  %v796 = vshll.u32 %v756, 8
  %v797 = vmul.u32.u64.compose %v796, %v795
  %v798 = vextract.low.u32 %v797
  %v799 = vextract.high.u32 %v797
  %v800 = vmul.u32.u64.compose %v796, %v791
  %v801 = vextract.low.u32 %v800
  %v802 = vextract.high.u32 %v800
  %v803 = vmul.u32 %v796, %v787
  %v804 = vadd.s32 %v799, %v801
  %vm805 = vc.u32 %v799, %v801
  %v806 = vadd.s32 %v802, 1
  %v807 = vsel %vm805, %v806, %v802
  %v808 = vadd.s32 %v803, %v807
  %v809 = vadd.s32 %v808, 536870912
  %v810 = vshrl.u32 %v809, 30
  %v811 = vshll.u32 %v810, 30
  %v812 = vsub.s32 %v808, %v811
  %vm813 = vcmp.lt.s32.totalorder %v812, 0
  %v814 = vsub.s32 0, %v812
  %v815 = vsel %vm813, %v814, %v812
  %v816 = vclz %v815
  %v817 = vsub.s32 %v816, 2
  %vm818 = vcmp.gt.s32.totalorder 0, %v817
  %v819 = vsel %vm818, 0, %v817
  %v820 = vsub.s32 32, %v819
  %v821 = vshll.u32 %v812, %v819
  %v822 = vshrl.u32 %v804, %v820
  %v823 = vor.u32 %v821, %v822
  %v824 = vsub.s32 4294967266, %v819
  %v825 = vadd.s32 %v824, 127
  %v826 = vshll.u32 %v825, 23
  %v827 = vor.u32 4788187, %v826
  %v828 = vand.u32 2147483647, %v827
  %v830 = vcvt.s32.f32 %v823
  %v831 = vmul.f32 %v830, %v828
  %v832 = vxor.u32 %v831, 2147483648
  %v833 = vsel %vm750, %v832, %v831
  %v834 = vsub.s32 4, %v810
  %v835 = vsel %vm750, %v834, %v810
  %v836 = vsel %vm749, %v17, %v833
  %v837 = vsel %vm749, 0, %v835
  %v838 = vcosq.f32.pop %v836
  %v839 = vsinq.f32.pop %v836
  %vm840 = vweird.f32 %v17
  %v841 = vand.u32 %v837, 3
  %vm842 = vcmp.lt.s32.totalorder %v841, 2
  %vm843 = vcmp.eq.s32.totalorder %v841, 0
  %v844 = vxor.u32 %v839, 2147483648
  %v845 = vsel %vm843, %v838, %v844
  %vm846 = vcmp.eq.s32.totalorder %v841, 2
  %v847 = vxor.u32 %v838, 2147483648
  %v848 = vsel %vm846, %v847, %v839
  %v849 = vsel %vm842, %v845, %v848
  %v850 = vsel %vm840, nan, %v849
  %v851 = vand.u32 2147483647, %v18
  %vm852 = vcmp.le.f32.partialorder %v851, 0.7853982
  %vm853 = vcmp.lt.s32.totalorder %v18, 0
  %v854 = vand.u32 %v18, 2139095040
  %v855 = vshrl.u32 %v854, 23
  %v856 = vsub.s32 %v855, 127
  %v857 = vand.u32 2147483647, %v18
  %v858 = vand.u32 %v857, 8388607
  %v859 = vor.u32 %v858, 8388608
  %v860 = vsub.s32 0, %v859
  %v861 = vadd.s32 %v856, 1
  %vm862 = vcmp.gt.s32.totalorder %v861, 0
  %v863 = vsel %vm862, %v861, 0
  %v864 = vshrl.u32 %v863, 5
  %v865 = vand.u32 %v863, 31
  %v866 = vsub.s32 32, %v865
  %v867 = vshrl.u32 683565275, %v866
  %v868 = vshll.u32 683565275, %v865
  %v869 = vshrl.u32 2475754826, %v866
  %v870 = vor.u32 %v868, %v869
  %v871 = vshll.u32 2475754826, %v865
  %v872 = vshrl.u32 2131351028, %v866
  %v873 = vor.u32 %v871, %v872
  %v874 = vshll.u32 2131351028, %v865
  %v875 = vshrl.u32 2102212464, %v866
  %v876 = vor.u32 %v874, %v875
  %v877 = vshll.u32 2102212464, %v865
  %v878 = vshrl.u32 920167782, %v866
  %v879 = vor.u32 %v877, %v878
  %v880 = vshll.u32 920167782, %v865
  %v881 = vshrl.u32 1326507024, %v866
  %v882 = vor.u32 %v880, %v881
  %vm883 = vcmp.lt.s32.totalorder %v864, 1
  %vm884 = vcmp.lt.s32.totalorder %v864, 2
  %vm885 = vcmp.lt.s32.totalorder %v864, 3
  %vm886 = vcmp.lt.s32.totalorder %v864, 4
  %v887 = vsel %vm883, %v867, %v870
  %v888 = vsel %vm886, %v876, 2102212464
  %v889 = vsel %vm885, %v873, %v888
  %v890 = vsel %vm884, %v887, %v889
  %v891 = vsel %vm883, %v870, %v873
  %v892 = vsel %vm886, %v879, 920167782
  %v893 = vsel %vm885, %v876, %v892
  %v894 = vsel %vm884, %v891, %v893
  %v895 = vsel %vm883, %v873, %v876
  %v896 = vsel %vm886, %v882, 1326507024
  %v897 = vsel %vm885, %v879, %v896
  %v898 = vsel %vm884, %v895, %v897
  %v899 = vshll.u32 %v859, 8
  %v900 = vmul.u32.u64.compose %v899, %v898
  %v901 = vextract.low.u32 %v900
  %v902 = vextract.high.u32 %v900
  %v903 = vmul.u32.u64.compose %v899, %v894
  %v904 = vextract.low.u32 %v903
  %v905 = vextract.high.u32 %v903
  %v906 = vmul.u32 %v899, %v890
  %v907 = vadd.s32 %v902, %v904
  %vm908 = vc.u32 %v902, %v904
  %v909 = vadd.s32 %v905, 1
  %v910 = vsel %vm908, %v909, %v905
  %v911 = vadd.s32 %v906, %v910
  %v912 = vadd.s32 %v911, 536870912
  %v913 = vshrl.u32 %v912, 30
  %v914 = vshll.u32 %v913, 30
  %v915 = vsub.s32 %v911, %v914
  %vm916 = vcmp.lt.s32.totalorder %v915, 0
  %v917 = vsub.s32 0, %v915
  %v918 = vsel %vm916, %v917, %v915
  %v919 = vclz %v918
  %v920 = vsub.s32 %v919, 2
  %vm921 = vcmp.gt.s32.totalorder 0, %v920
  %v922 = vsel %vm921, 0, %v920
  %v923 = vsub.s32 32, %v922
  %v924 = vshll.u32 %v915, %v922
  %v925 = vshrl.u32 %v907, %v923
  %v926 = vor.u32 %v924, %v925
  %v927 = vsub.s32 4294967266, %v922
  %v928 = vadd.s32 %v927, 127
  %v929 = vshll.u32 %v928, 23
  %v930 = vor.u32 4788187, %v929
  %v931 = vand.u32 2147483647, %v930
  %v933 = vcvt.s32.f32 %v926
  %v934 = vmul.f32 %v933, %v931
  %v935 = vxor.u32 %v934, 2147483648
  %v936 = vsel %vm853, %v935, %v934
  %v937 = vsub.s32 4, %v913
  %v938 = vsel %vm853, %v937, %v913
  %v939 = vsel %vm852, %v18, %v936
  %v940 = vsel %vm852, 0, %v938
  %v941 = vcosq.f32.pop %v939
  %v942 = vsinq.f32.pop %v939
  %vm943 = vweird.f32 %v18
  %v944 = vadd.s32 %v940, 3
  %v945 = vand.u32 %v944, 3
  %vm946 = vcmp.lt.s32.totalorder %v945, 2
  %vm947 = vcmp.eq.s32.totalorder %v945, 0
  %v948 = vxor.u32 %v942, 2147483648
  %v949 = vsel %vm947, %v941, %v948
  %vm950 = vcmp.eq.s32.totalorder %v945, 2
  %v951 = vxor.u32 %v941, 2147483648
  %v952 = vsel %vm950, %v951, %v942
  %v953 = vsel %vm946, %v949, %v952
  %v954 = vsel %vm943, nan, %v953
  %v955 = vand.u32 2147483647, %v18
  %vm956 = vcmp.le.f32.partialorder %v955, 0.7853982
  %vm957 = vcmp.lt.s32.totalorder %v18, 0
  %v958 = vand.u32 %v18, 2139095040
  %v959 = vshrl.u32 %v958, 23
  %v960 = vsub.s32 %v959, 127
  %v961 = vand.u32 2147483647, %v18
  %v962 = vand.u32 %v961, 8388607
  %v963 = vor.u32 %v962, 8388608
  %v964 = vsub.s32 0, %v963
  %v965 = vadd.s32 %v960, 1
  %vm966 = vcmp.gt.s32.totalorder %v965, 0
  %v967 = vsel %vm966, %v965, 0
  %v968 = vshrl.u32 %v967, 5
  %v969 = vand.u32 %v967, 31
  %v970 = vsub.s32 32, %v969
  %v971 = vshrl.u32 683565275, %v970
  %v972 = vshll.u32 683565275, %v969
  %v973 = vshrl.u32 2475754826, %v970
  %v974 = vor.u32 %v972, %v973
  %v975 = vshll.u32 2475754826, %v969
  %v976 = vshrl.u32 2131351028, %v970
  %v977 = vor.u32 %v975, %v976
  %v978 = vshll.u32 2131351028, %v969
  %v979 = vshrl.u32 2102212464, %v970
  %v980 = vor.u32 %v978, %v979
  %v981 = vshll.u32 2102212464, %v969
  %v982 = vshrl.u32 920167782, %v970
  %v983 = vor.u32 %v981, %v982
  %v984 = vshll.u32 920167782, %v969
  %v985 = vshrl.u32 1326507024, %v970
  %v986 = vor.u32 %v984, %v985
  %vm987 = vcmp.lt.s32.totalorder %v968, 1
  %vm988 = vcmp.lt.s32.totalorder %v968, 2
  %vm989 = vcmp.lt.s32.totalorder %v968, 3
  %vm990 = vcmp.lt.s32.totalorder %v968, 4
  %v991 = vsel %vm987, %v971, %v974
  %v992 = vsel %vm990, %v980, 2102212464
  %v993 = vsel %vm989, %v977, %v992
  %v994 = vsel %vm988, %v991, %v993
  %v995 = vsel %vm987, %v974, %v977
  %v996 = vsel %vm990, %v983, 920167782
  %v997 = vsel %vm989, %v980, %v996
  %v998 = vsel %vm988, %v995, %v997
  %v999 = vsel %vm987, %v977, %v980
  %v1000 = vsel %vm990, %v986, 1326507024
  %v1001 = vsel %vm989, %v983, %v1000
  %v1002 = vsel %vm988, %v999, %v1001
  %v1003 = vshll.u32 %v963, 8
  %v1004 = vmul.u32.u64.compose %v1003, %v1002
  %v1005 = vextract.low.u32 %v1004
  %v1006 = vextract.high.u32 %v1004
  %v1007 = vmul.u32.u64.compose %v1003, %v998
  %v1008 = vextract.low.u32 %v1007
  %v1009 = vextract.high.u32 %v1007
  %v1010 = vmul.u32 %v1003, %v994
  %v1011 = vadd.s32 %v1006, %v1008
  %vm1012 = vc.u32 %v1006, %v1008
  %v1013 = vadd.s32 %v1009, 1
  %v1014 = vsel %vm1012, %v1013, %v1009
  %v1015 = vadd.s32 %v1010, %v1014
  %v1016 = vadd.s32 %v1015, 536870912
  %v1017 = vshrl.u32 %v1016, 30
  %v1018 = vshll.u32 %v1017, 30
  %v1019 = vsub.s32 %v1015, %v1018
  %vm1020 = vcmp.lt.s32.totalorder %v1019, 0
  %v1021 = vsub.s32 0, %v1019
  %v1022 = vsel %vm1020, %v1021, %v1019
  %v1023 = vclz %v1022
  %v1024 = vsub.s32 %v1023, 2
  %vm1025 = vcmp.gt.s32.totalorder 0, %v1024
  %v1026 = vsel %vm1025, 0, %v1024
  %v1027 = vsub.s32 32, %v1026
  %v1028 = vshll.u32 %v1019, %v1026
  %v1029 = vshrl.u32 %v1011, %v1027
  %v1030 = vor.u32 %v1028, %v1029
  %v1031 = vsub.s32 4294967266, %v1026
  %v1032 = vadd.s32 %v1031, 127
  %v1033 = vshll.u32 %v1032, 23
  %v1034 = vor.u32 4788187, %v1033
  %v1035 = vand.u32 2147483647, %v1034
  %v1037 = vcvt.s32.f32 %v1030
  %v1038 = vmul.f32 %v1037, %v1035
  %v1039 = vxor.u32 %v1038, 2147483648
  %v1040 = vsel %vm957, %v1039, %v1038
  %v1041 = vsub.s32 4, %v1017
  %v1042 = vsel %vm957, %v1041, %v1017
  %v1043 = vsel %vm956, %v18, %v1040
  %v1044 = vsel %vm956, 0, %v1042
  %v1045 = vcosq.f32.pop %v1043
  %v1046 = vsinq.f32.pop %v1043
  %vm1047 = vweird.f32 %v18
  %v1048 = vand.u32 %v1044, 3
  %vm1049 = vcmp.lt.s32.totalorder %v1048, 2
  %vm1050 = vcmp.eq.s32.totalorder %v1048, 0
  %v1051 = vxor.u32 %v1046, 2147483648
  %v1052 = vsel %vm1050, %v1045, %v1051
  %vm1053 = vcmp.eq.s32.totalorder %v1048, 2
  %v1054 = vxor.u32 %v1045, 2147483648
  %v1055 = vsel %vm1053, %v1054, %v1046
  %v1056 = vsel %vm1049, %v1052, %v1055
  %v1057 = vsel %vm1047, nan, %v1056
  %v1058 = vand.u32 2147483647, %v19
  %vm1059 = vcmp.le.f32.partialorder %v1058, 0.7853982
  %vm1060 = vcmp.lt.s32.totalorder %v19, 0
  %v1061 = vand.u32 %v19, 2139095040
  %v1062 = vshrl.u32 %v1061, 23
  %v1063 = vsub.s32 %v1062, 127
  %v1064 = vand.u32 2147483647, %v19
  %v1065 = vand.u32 %v1064, 8388607
  %v1066 = vor.u32 %v1065, 8388608
  %v1067 = vsub.s32 0, %v1066
  %v1068 = vadd.s32 %v1063, 1
  %vm1069 = vcmp.gt.s32.totalorder %v1068, 0
  %v1070 = vsel %vm1069, %v1068, 0
  %v1071 = vshrl.u32 %v1070, 5
  %v1072 = vand.u32 %v1070, 31
  %v1073 = vsub.s32 32, %v1072
  %v1074 = vshrl.u32 683565275, %v1073
  %v1075 = vshll.u32 683565275, %v1072
  %v1076 = vshrl.u32 2475754826, %v1073
  %v1077 = vor.u32 %v1075, %v1076
  %v1078 = vshll.u32 2475754826, %v1072
  %v1079 = vshrl.u32 2131351028, %v1073
  %v1080 = vor.u32 %v1078, %v1079
  %v1081 = vshll.u32 2131351028, %v1072
  %v1082 = vshrl.u32 2102212464, %v1073
  %v1083 = vor.u32 %v1081, %v1082
  %v1084 = vshll.u32 2102212464, %v1072
  %v1085 = vshrl.u32 920167782, %v1073
  %v1086 = vor.u32 %v1084, %v1085
  %v1087 = vshll.u32 920167782, %v1072
  %v1088 = vshrl.u32 1326507024, %v1073
  %v1089 = vor.u32 %v1087, %v1088
  %vm1090 = vcmp.lt.s32.totalorder %v1071, 1
  %vm1091 = vcmp.lt.s32.totalorder %v1071, 2
  %vm1092 = vcmp.lt.s32.totalorder %v1071, 3
  %vm1093 = vcmp.lt.s32.totalorder %v1071, 4
  %v1094 = vsel %vm1090, %v1074, %v1077
  %v1095 = vsel %vm1093, %v1083, 2102212464
  %v1096 = vsel %vm1092, %v1080, %v1095
  %v1097 = vsel %vm1091, %v1094, %v1096
  %v1098 = vsel %vm1090, %v1077, %v1080
  %v1099 = vsel %vm1093, %v1086, 920167782
  %v1100 = vsel %vm1092, %v1083, %v1099
  %v1101 = vsel %vm1091, %v1098, %v1100
  %v1102 = vsel %vm1090, %v1080, %v1083
  %v1103 = vsel %vm1093, %v1089, 1326507024
  %v1104 = vsel %vm1092, %v1086, %v1103
  %v1105 = vsel %vm1091, %v1102, %v1104
  %v1106 = vshll.u32 %v1066, 8
  %v1107 = vmul.u32.u64.compose %v1106, %v1105
  %v1108 = vextract.low.u32 %v1107
  %v1109 = vextract.high.u32 %v1107
  %v1110 = vmul.u32.u64.compose %v1106, %v1101
  %v1111 = vextract.low.u32 %v1110
  %v1112 = vextract.high.u32 %v1110
  %v1113 = vmul.u32 %v1106, %v1097
  %v1114 = vadd.s32 %v1109, %v1111
  %vm1115 = vc.u32 %v1109, %v1111
  %v1116 = vadd.s32 %v1112, 1
  %v1117 = vsel %vm1115, %v1116, %v1112
  %v1118 = vadd.s32 %v1113, %v1117
  %v1119 = vadd.s32 %v1118, 536870912
  %v1120 = vshrl.u32 %v1119, 30
  %v1121 = vshll.u32 %v1120, 30
  %v1122 = vsub.s32 %v1118, %v1121
  %vm1123 = vcmp.lt.s32.totalorder %v1122, 0
  %v1124 = vsub.s32 0, %v1122
  %v1125 = vsel %vm1123, %v1124, %v1122
  %v1126 = vclz %v1125
  %v1127 = vsub.s32 %v1126, 2
  %vm1128 = vcmp.gt.s32.totalorder 0, %v1127
  %v1129 = vsel %vm1128, 0, %v1127
  %v1130 = vsub.s32 32, %v1129
  %v1131 = vshll.u32 %v1122, %v1129
  %v1132 = vshrl.u32 %v1114, %v1130
  %v1133 = vor.u32 %v1131, %v1132
  %v1134 = vsub.s32 4294967266, %v1129
  %v1135 = vadd.s32 %v1134, 127
  %v1136 = vshll.u32 %v1135, 23
  %v1137 = vor.u32 4788187, %v1136
  %v1138 = vand.u32 2147483647, %v1137
  %v1140 = vcvt.s32.f32 %v1133
  %v1141 = vmul.f32 %v1140, %v1138
  %v1142 = vxor.u32 %v1141, 2147483648
  %v1143 = vsel %vm1060, %v1142, %v1141
  %v1144 = vsub.s32 4, %v1120
  %v1145 = vsel %vm1060, %v1144, %v1120
  %v1146 = vsel %vm1059, %v19, %v1143
  %v1147 = vsel %vm1059, 0, %v1145
  %v1148 = vcosq.f32.pop %v1146
  %v1149 = vsinq.f32.pop %v1146
  %vm1150 = vweird.f32 %v19
  %v1151 = vadd.s32 %v1147, 3
  %v1152 = vand.u32 %v1151, 3
  %vm1153 = vcmp.lt.s32.totalorder %v1152, 2
  %vm1154 = vcmp.eq.s32.totalorder %v1152, 0
  %v1155 = vxor.u32 %v1149, 2147483648
  %v1156 = vsel %vm1154, %v1148, %v1155
  %vm1157 = vcmp.eq.s32.totalorder %v1152, 2
  %v1158 = vxor.u32 %v1148, 2147483648
  %v1159 = vsel %vm1157, %v1158, %v1149
  %v1160 = vsel %vm1153, %v1156, %v1159
  %v1161 = vsel %vm1150, nan, %v1160
  %v1162 = vand.u32 2147483647, %v19
  %vm1163 = vcmp.le.f32.partialorder %v1162, 0.7853982
  %vm1164 = vcmp.lt.s32.totalorder %v19, 0
  %v1165 = vand.u32 %v19, 2139095040
  %v1166 = vshrl.u32 %v1165, 23
  %v1167 = vsub.s32 %v1166, 127
  %v1168 = vand.u32 2147483647, %v19
  %v1169 = vand.u32 %v1168, 8388607
  %v1170 = vor.u32 %v1169, 8388608
  %v1171 = vsub.s32 0, %v1170
  %v1172 = vadd.s32 %v1167, 1
  %vm1173 = vcmp.gt.s32.totalorder %v1172, 0
  %v1174 = vsel %vm1173, %v1172, 0
  %v1175 = vshrl.u32 %v1174, 5
  %v1176 = vand.u32 %v1174, 31
  %v1177 = vsub.s32 32, %v1176
  %v1178 = vshrl.u32 683565275, %v1177
  %v1179 = vshll.u32 683565275, %v1176
  %v1180 = vshrl.u32 2475754826, %v1177
  %v1181 = vor.u32 %v1179, %v1180
  %v1182 = vshll.u32 2475754826, %v1176
  %v1183 = vshrl.u32 2131351028, %v1177
  %v1184 = vor.u32 %v1182, %v1183
  %v1185 = vshll.u32 2131351028, %v1176
  %v1186 = vshrl.u32 2102212464, %v1177
  %v1187 = vor.u32 %v1185, %v1186
  %v1188 = vshll.u32 2102212464, %v1176
  %v1189 = vshrl.u32 920167782, %v1177
  %v1190 = vor.u32 %v1188, %v1189
  %v1191 = vshll.u32 920167782, %v1176
  %v1192 = vshrl.u32 1326507024, %v1177
  %v1193 = vor.u32 %v1191, %v1192
  %vm1194 = vcmp.lt.s32.totalorder %v1175, 1
  %vm1195 = vcmp.lt.s32.totalorder %v1175, 2
  %vm1196 = vcmp.lt.s32.totalorder %v1175, 3
  %vm1197 = vcmp.lt.s32.totalorder %v1175, 4
  %v1198 = vsel %vm1194, %v1178, %v1181
  %v1199 = vsel %vm1197, %v1187, 2102212464
  %v1200 = vsel %vm1196, %v1184, %v1199
  %v1201 = vsel %vm1195, %v1198, %v1200
  %v1202 = vsel %vm1194, %v1181, %v1184
  %v1203 = vsel %vm1197, %v1190, 920167782
  %v1204 = vsel %vm1196, %v1187, %v1203
  %v1205 = vsel %vm1195, %v1202, %v1204
  %v1206 = vsel %vm1194, %v1184, %v1187
  %v1207 = vsel %vm1197, %v1193, 1326507024
  %v1208 = vsel %vm1196, %v1190, %v1207
  %v1209 = vsel %vm1195, %v1206, %v1208
  %v1210 = vshll.u32 %v1170, 8
  %v1211 = vmul.u32.u64.compose %v1210, %v1209
  %v1212 = vextract.low.u32 %v1211
  %v1213 = vextract.high.u32 %v1211
  %v1214 = vmul.u32.u64.compose %v1210, %v1205
  %v1215 = vextract.low.u32 %v1214
  %v1216 = vextract.high.u32 %v1214
  %v1217 = vmul.u32 %v1210, %v1201
  %v1218 = vadd.s32 %v1213, %v1215
  %vm1219 = vc.u32 %v1213, %v1215
  %v1220 = vadd.s32 %v1216, 1
  %v1221 = vsel %vm1219, %v1220, %v1216
  %v1222 = vadd.s32 %v1217, %v1221
  %v1223 = vadd.s32 %v1222, 536870912
  %v1224 = vshrl.u32 %v1223, 30
  %v1225 = vshll.u32 %v1224, 30
  %v1226 = vsub.s32 %v1222, %v1225
  %vm1227 = vcmp.lt.s32.totalorder %v1226, 0
  %v1228 = vsub.s32 0, %v1226
  %v1229 = vsel %vm1227, %v1228, %v1226
  %v1230 = vclz %v1229
  %v1231 = vsub.s32 %v1230, 2
  %vm1232 = vcmp.gt.s32.totalorder 0, %v1231
  %v1233 = vsel %vm1232, 0, %v1231
  %v1234 = vsub.s32 32, %v1233
  %v1235 = vshll.u32 %v1226, %v1233
  %v1236 = vshrl.u32 %v1218, %v1234
  %v1237 = vor.u32 %v1235, %v1236
  %v1238 = vsub.s32 4294967266, %v1233
  %v1239 = vadd.s32 %v1238, 127
  %v1240 = vshll.u32 %v1239, 23
  %v1241 = vor.u32 4788187, %v1240
  %v1242 = vand.u32 2147483647, %v1241
  %v1244 = vcvt.s32.f32 %v1237
  %v1245 = vmul.f32 %v1244, %v1242
  %v1246 = vxor.u32 %v1245, 2147483648
  %v1247 = vsel %vm1164, %v1246, %v1245
  %v1248 = vsub.s32 4, %v1224
  %v1249 = vsel %vm1164, %v1248, %v1224
  %v1250 = vsel %vm1163, %v19, %v1247
  %v1251 = vsel %vm1163, 0, %v1249
  %v1252 = vcosq.f32.pop %v1250
  %v1253 = vsinq.f32.pop %v1250
  %vm1254 = vweird.f32 %v19
  %v1255 = vand.u32 %v1251, 3
  %vm1256 = vcmp.lt.s32.totalorder %v1255, 2
  %vm1257 = vcmp.eq.s32.totalorder %v1255, 0
  %v1258 = vxor.u32 %v1253, 2147483648
  %v1259 = vsel %vm1257, %v1252, %v1258
  %vm1260 = vcmp.eq.s32.totalorder %v1255, 2
  %v1261 = vxor.u32 %v1252, 2147483648
  %v1262 = vsel %vm1260, %v1261, %v1253
  %v1263 = vsel %vm1256, %v1259, %v1262
  %v1264 = vsel %vm1254, nan, %v1263
  %v1265 = vmul.f32 %v436, %v643
  %v1266 = vmul.f32 %v1057, %v1264
  %v1267 = vsub.f32 %v1265, %v1266
  %v1268 = vand.u32 2147483647, %v1267
  %v1269 = vmul.f32 %v126, %v333
  %v1270 = vmul.f32 %v1269, %v643
  %v1271 = vmul.f32 %v229, %v540
  %v1272 = vsub.f32 %v1270, %v1271
  %v1273 = vmul.f32 %v747, %v954
  %v1274 = vmul.f32 %v1273, %v1264
  %v1275 = vmul.f32 %v850, %v1161
  %v1276 = vsub.f32 %v1274, %v1275
  %v1277 = vsub.f32 %v1272, %v1276
  %v1278 = vand.u32 2147483647, %v1277
  %v1279 = vadd.f32 %v1268, %v1278
  %v1280 = vmul.f32 %v229, %v333
  %v1281 = vmul.f32 %v1280, %v643
  %v1282 = vmul.f32 %v126, %v540
  %v1283 = vadd.f32 %v1281, %v1282
  %v1284 = vmul.f32 %v850, %v954
  %v1285 = vmul.f32 %v1284, %v1264
  %v1286 = vmul.f32 %v747, %v1161
  %v1287 = vadd.f32 %v1285, %v1286
  %v1288 = vsub.f32 %v1283, %v1287
  %v1289 = vand.u32 2147483647, %v1288
  %v1290 = vadd.f32 %v1279, %v1289
  %v1291 = vmul.f32 %v436, %v540
  %v1292 = vmul.f32 %v1057, %v1161
  %v1293 = vsub.f32 %v1291, %v1292
  %v1294 = vand.u32 2147483647, %v1293
  %v1295 = vadd.f32 %v1290, %v1294
  %v1296 = vmul.f32 %v1269, %v540
  %v1297 = vmul.f32 %v229, %v643
  %v1298 = vadd.f32 %v1296, %v1297
  %v1299 = vmul.f32 %v1273, %v1161
  %v1300 = vmul.f32 %v850, %v1264
  %v1301 = vadd.f32 %v1299, %v1300
  %v1302 = vsub.f32 %v1298, %v1301
  %v1303 = vand.u32 2147483647, %v1302
  %v1304 = vadd.f32 %v1295, %v1303
  %v1305 = vmul.f32 %v1280, %v540
  %v1306 = vmul.f32 %v126, %v643
  %v1307 = vsub.f32 %v1305, %v1306
  %v1308 = vmul.f32 %v1284, %v1161
  %v1309 = vmul.f32 %v747, %v1264
  %v1310 = vsub.f32 %v1308, %v1309
  %v1311 = vsub.f32 %v1307, %v1310
  %v1312 = vand.u32 2147483647, %v1311
  %v1313 = vadd.f32 %v1304, %v1312
  %v1314 = vsub.f32 0.0, %v333
  %v1315 = vsub.f32 0.0, %v954
  %v1316 = vsub.f32 %v1314, %v1315
  %v1317 = vand.u32 2147483647, %v1316
  %v1318 = vadd.f32 %v1313, %v1317
  %v1319 = vmul.f32 %v126, %v436
  %v1320 = vmul.f32 %v747, %v1057
  %v1321 = vsub.f32 %v1319, %v1320
  %v1322 = vand.u32 2147483647, %v1321
  %v1323 = vadd.f32 %v1318, %v1322
  %v1324 = vmul.f32 %v229, %v436
  %v1325 = vmul.f32 %v850, %v1057
  %v1326 = vsub.f32 %v1324, %v1325
  %v1327 = vand.u32 2147483647, %v1326
  %v1328 = vadd.f32 %v1323, %v1327
  %v1329 = vsub.f32 %v14, %v20
  %v1330 = vand.u32 2147483647, %v1329
  %v1331 = vsub.f32 %v15, %v21
  %v1332 = vand.u32 2147483647, %v1331
  %v1333 = vadd.f32 %v1330, %v1332
  %v1334 = vsub.f32 %v16, %v22
  %v1335 = vand.u32 2147483647, %v1334
  %v1336 = vadd.f32 %v1333, %v1335
  %v1337 = vmul.f32 %v1328, 0.6944444
  %v1338 = vmul.f32 %v1336, 0.020833334
  %v1339 = vadd.f32 %v1337, %v1338
  %vm1340 = vcmask 15360
  %1341 = vst.msk [vmem:[%s2] sm:$0xff] %vm1340, %v1339
  // Predicated region
  $region10: #{tpu_custom_call.1} parent=0 // pred_check
    _
  $region11: #{tpu_custom_call.1} parent=0 // pred_check_branch
    %1343 = sbr.rel (0) target = $region13
  $region12: #{tpu_custom_call.1} parent=0 // pred_region
    _
  $region13: #{tpu_custom_call.1} parent=0 // pred_fallthru
    _
  // Predicated region
  $region14: #{tpu_custom_call.1} parent=0 // pred_check
    _
  $region15: #{tpu_custom_call.1} parent=0 // pred_check_branch
    %1345 = sbr.rel (0) target = $region17
  $region16: #{tpu_custom_call.1} parent=0 // pred_region
    _
  $region17: #{tpu_custom_call.1} parent=0 // pred_fallthru
    _

</llo_original>
